<compile_context>
chip_gen: v5e
topology: v5e:2x2
jax: 0.10.0
libtpu: 0.0.40
codegen_flags: <defaults>
</compile_context>

<pallas_src>
import functools

import jax
import jax.numpy as jnp
from jax import lax
from jax.experimental import pallas as pl
from jax.experimental.pallas import tpu as pltpu

_SUBLANE_PAD = 16  # bf16 sublane tile: makes the (Bblk*N, E) collapse relayout-free


def _attention_kernel(enc_ref, dec_ref, we_ref, be_ref, wd_ref, bd_ref,
                      wf_ref, awe_ref, alpha_ref, *, n_valid):
    Bblk, Npad, E = enc_ref.shape
    A = we_ref.shape[1]

    # Encoder block arrives f32; cast to bf16 right at the MXU boundary
    # (avoids a separate HBM convert pass in the wrapper).
    enc = enc_ref[...].astype(jnp.bfloat16)               # (Bblk, Npad, E)

    # att1 = tanh(enc @ W_enc + b_enc): one big MXU matmul over Bblk*Npad rows.
    # Npad is a multiple of 16, so reshape/unreshape is a pure layout no-op.
    enc_flat = enc.reshape(Bblk * Npad, E)
    att1 = jnp.tanh(
        jnp.dot(enc_flat, we_ref[...], preferred_element_type=jnp.float32)
        + be_ref[...]
    ).reshape(Bblk, Npad, A)                               # (Bblk, Npad, A) f32

    # att2 = tanh(dec @ W_dec + b_dec): whole batch block in one matmul.
    att2 = jnp.tanh(
        jnp.dot(dec_ref[...].astype(jnp.bfloat16), wd_ref[...],
                preferred_element_type=jnp.float32)
        + bd_ref[...]
    )                                                      # (Bblk, A) f32

    # scores = relu(att1 + att2) . w_full   (reduced along the lane axis A).
    # w_full is a (1, A) row so this stays lane-dense; full_att's scalar bias
    # is omitted because a constant shift cancels in the softmax below.
    h = jnp.maximum(att1 + att2[:, None, :], 0.0)          # (Bblk, Npad, A)
    scores = jnp.sum(h * wf_ref[...], axis=-1)             # (Bblk, Npad) f32

    if n_valid < Npad:  # static at trace time: mask padded pixel positions
        lane = lax.broadcasted_iota(jnp.int32, (Bblk, Npad), 1)
        scores = jnp.where(lane < n_valid, scores, -jnp.inf)

    # Softmax over the pixel axis (lane axis), f32.  Padded lanes -> alpha = 0.
    m = jnp.max(scores, axis=-1, keepdims=True)            # (Bblk, 1)
    e = jnp.exp(scores - m)
    denom = jnp.sum(e, axis=-1, keepdims=True)
    alpha = e * pl.reciprocal(denom, approx=True)          # (Bblk, Npad)
    # (approx reciprocal -> alpha rows sum to 1 only to ~1e-3/1e-4 rel. error)

    # attention_weighted_encoding on the MXU: (Bblk,1,Npad) @ (Bblk,Npad,E).
    awe = jnp.einsum(
        'bqn,bne->bqe',
        alpha[:, None, :].astype(enc.dtype), enc,
        preferred_element_type=jnp.float32,
    )[:, 0, :]                                             # (Bblk, E) f32

    awe_ref[...] = awe.astype(awe_ref.dtype)
    alpha_ref[...] = alpha.astype(alpha_ref.dtype)


def _pick_block_b(B):
    # Prefer >= 2 grid steps (DMA/compute overlap, v7x dual-TC sharding) with a
    # sublane-aligned batch block.  block_b=8 also fits v7x's tighter VMEM at
    # realistic sizes; on v6e callers may pass block_b=16..32 plus a raised
    # vmem_limit_bytes.
    if B % 8 == 0 and B >= 16:
        return 8
    return B  # tiny / odd batches: single block covering the full batch dim


def attention_forward(encoder_out, decoder_hidden, params, *,
                      block_b=None, vmem_limit_bytes=None):
    """params: dict with we (E,A), be (A,), wd (D,A), bd (A,), wf (A,1), bf ()."""
    B, N, E = encoder_out.shape
    D = decoder_hidden.shape[1]
    A = params["we"].shape[1]

    if block_b is None:
        block_b = _pick_block_b(B)
    assert B % block_b == 0, "batch must be divisible by block_b"
    assert block_b == B or block_b % 8 == 0, "partial batch blocks need 8-alignment"

    # Pad the pixel axis to a sublane multiple so the in-kernel collapse is
    # free; padded scores are masked to -inf inside the kernel.
    n_pad = ((N + _SUBLANE_PAD - 1) // _SUBLANE_PAD) * _SUBLANE_PAD
    enc = encoder_out if encoder_out.dtype == jnp.float32 else encoder_out.astype(jnp.float32)
    if n_pad != N:
        enc = jnp.pad(enc, ((0, 0), (0, n_pad - N), (0, 0)))
    dec = decoder_hidden.astype(jnp.float32)

    # Weights to bf16 (small; halves their VMEM footprint); biases / w_full f32.
    we = params["we"].astype(jnp.bfloat16)
    wd = params["wd"].astype(jnp.bfloat16)
    be = params["be"].reshape(1, A).astype(jnp.float32)
    bd = params["bd"].reshape(1, A).astype(jnp.float32)
    wf = params["wf"].reshape(1, A).astype(jnp.float32)   # lane-dense row
    # b_full intentionally not passed: it cancels in the softmax.

    kernel = functools.partial(_attention_kernel, n_valid=N)

    awe, alpha_pad = pl.pallas_call(
        kernel,
        out_shape=(
            jax.ShapeDtypeStruct((B, E), jnp.float32),
            jax.ShapeDtypeStruct((B, n_pad), jnp.float32),   # lane-dense alpha
        ),
        grid_spec=pltpu.PrefetchScalarGridSpec(
            num_scalar_prefetch=0,
            grid=(B // block_b,),
            in_specs=[
                pl.BlockSpec((block_b, n_pad, E), lambda b: (b, 0, 0)),  # encoder_out
                pl.BlockSpec((block_b, D), lambda b: (b, 0)),            # decoder_hidden
                pl.BlockSpec((E, A), lambda b: (0, 0)),                  # W_enc
                pl.BlockSpec((1, A), lambda b: (0, 0)),                  # b_enc
                pl.BlockSpec((D, A), lambda b: (0, 0)),                  # W_dec
                pl.BlockSpec((1, A), lambda b: (0, 0)),                  # b_dec
                pl.BlockSpec((1, A), lambda b: (0, 0)),                  # w_full row
            ],
            out_specs=[
                pl.BlockSpec((block_b, E), lambda b: (b, 0)),            # awe
                pl.BlockSpec((block_b, n_pad), lambda b: (b, 0)),        # alpha
            ],
        ),
        compiler_params=pltpu.CompilerParams(
            dimension_semantics=("parallel",),   # shards batch blocks across v7x's 2 TCs
            vmem_limit_bytes=vmem_limit_bytes,
        ),
    )(enc, dec, we, be, wd, bd, wf)

    alpha = alpha_pad[:, :N] if n_pad != N else alpha_pad
    return awe, alpha


def _reference(encoder_out, decoder_hidden, params):
    att1 = jnp.tanh(encoder_out @ params["we"] + params["be"])
    att2 = jnp.tanh(decoder_hidden @ params["wd"] + params["bd"])
    h = jnp.maximum(att1 + att2[:, None, :], 0.0)
    att = (h @ params["wf"])[..., 0] + params["bf"]
    alpha = jax.nn.softmax(att, axis=1)
    awe = jnp.sum(encoder_out * alpha[:, :, None], axis=1)
    return awe, alpha


if __name__ == "__main__":
    key = jax.random.PRNGKey(0)
    B, N = 16, 20                      # N deliberately not a sublane multiple
    encoder_dim, decoder_dim, attention_dim = 32, 32, 32

    keys = jax.random.split(key, 8)

    def u(k, shape, fan_in):
        bound = 1.0 / jnp.sqrt(fan_in)
        return jax.random.uniform(k, shape, jnp.float32, -bound, bound)

    params = {
        "we": u(keys[0], (encoder_dim, attention_dim), encoder_dim),
        "be": u(keys[1], (attention_dim,), encoder_dim),
        "wd": u(keys[2], (decoder_dim, attention_dim), decoder_dim),
        "bd": u(keys[3], (attention_dim,), decoder_dim),
        "wf": u(keys[4], (attention_dim, 1), attention_dim),
        "bf": u(keys[5], (), attention_dim),
    }

    encoder_out = jax.random.normal(keys[6], (B, N, encoder_dim), jnp.float32)
    decoder_hidden = jax.random.normal(keys[7], (B, decoder_dim), jnp.float32)

    awe, alpha = attention_forward(encoder_out, decoder_hidden, params)
    jax.block_until_ready((awe, alpha))

    awe_ref, alpha_ref = _reference(encoder_out, decoder_hidden, params)
    assert awe.shape == (B, encoder_dim) and alpha.shape == (B, N)
    # bf16 MXU inputs (f32 accumulation) -> compare against the f32 reference
    # with a tolerance covering bf16 input rounding + approx reciprocal.
    assert jnp.allclose(awe, awe_ref, atol=2e-2, rtol=2e-2), "awe mismatch"
    assert jnp.allclose(alpha, alpha_ref, atol=2e-2, rtol=2e-2), "alpha mismatch"

    print("KERNEL_OK")
</pallas_src>

<mosaic_0001>
module attributes {stable_mosaic.version = 11 : i64} {
  func.func @_attention_kernel(%arg0: i32, %arg1: memref<8x32x32xf32, #tpu.memory_space<vmem>>, %arg2: memref<8x32xf32, #tpu.memory_space<vmem>>, %arg3: memref<32x32xbf16, #tpu.memory_space<vmem>>, %arg4: memref<1x32xf32, #tpu.memory_space<vmem>>, %arg5: memref<32x32xbf16, #tpu.memory_space<vmem>>, %arg6: memref<1x32xf32, #tpu.memory_space<vmem>>, %arg7: memref<1x32xf32, #tpu.memory_space<vmem>>, %arg8: memref<8x32xf32, #tpu.memory_space<vmem>>, %arg9: memref<8x32xf32, #tpu.memory_space<vmem>>) attributes {dimension_semantics = [#tpu.dimension_semantics<parallel>], iteration_bounds = array<i64: 2>, scalar_prefetch = 0 : i64, scratch_operands = 0 : i64, tpu.core_type = #tpu.core_type<tc>, window_params = [{transform_indices = @transform_0, window_bounds = array<i64: 8, 32, 32>}, {transform_indices = @transform_1, window_bounds = array<i64: 8, 32>}, {pipeline_mode = #tpu.pipeline_mode<synchronous>, transform_indices = @transform_2, window_bounds = array<i64: 32, 32>}, {pipeline_mode = #tpu.pipeline_mode<synchronous>, transform_indices = @transform_3, window_bounds = array<i64: 1, 32>}, {pipeline_mode = #tpu.pipeline_mode<synchronous>, transform_indices = @transform_4, window_bounds = array<i64: 32, 32>}, {pipeline_mode = #tpu.pipeline_mode<synchronous>, transform_indices = @transform_5, window_bounds = array<i64: 1, 32>}, {pipeline_mode = #tpu.pipeline_mode<synchronous>, transform_indices = @transform_6, window_bounds = array<i64: 1, 32>}, {transform_indices = @transform_7, window_bounds = array<i64: 8, 32>}, {transform_indices = @transform_8, window_bounds = array<i64: 8, 32>}]} {
    %c0 = arith.constant 0 : index
    %c0_0 = arith.constant 0 : index
    %c0_1 = arith.constant 0 : index
    %0 = vector.load %arg1[%c0, %c0_0, %c0_1] : memref<8x32x32xf32, #tpu.memory_space<vmem>>, vector<8x32x32xf32>
    %1 = arith.truncf %0 : vector<8x32x32xf32> to vector<8x32x32xbf16>
    %2 = vector.shape_cast %1 : vector<8x32x32xbf16> to vector<256x32xbf16>
    %c0_2 = arith.constant 0 : index
    %c0_3 = arith.constant 0 : index
    %3 = vector.load %arg3[%c0_2, %c0_3] : memref<32x32xbf16, #tpu.memory_space<vmem>>, vector<32x32xbf16>
    %cst = arith.constant dense<0.000000e+00> : vector<256x32xf32>
    %4 = tpu.matmul %2, %3, %cst {dimension_numbers = #tpu.dot_dimension_numbers<[1], [0], [0], [1], [0, 0, 1, 1], [], []>} : vector<256x32xbf16>, vector<32x32xbf16>, vector<256x32xf32> -> vector<256x32xf32>
    %c0_4 = arith.constant 0 : index
    %c0_5 = arith.constant 0 : index
    %5 = vector.load %arg4[%c0_4, %c0_5] : memref<1x32xf32, #tpu.memory_space<vmem>>, vector<1x32xf32>
    %6 = vector.broadcast %5 : vector<1x32xf32> to vector<256x32xf32>
    %7 = arith.addf %4, %6 : vector<256x32xf32>
    %8 = math.tanh %7 : vector<256x32xf32>
    %9 = vector.shape_cast %8 : vector<256x32xf32> to vector<8x32x32xf32>
    %c0_6 = arith.constant 0 : index
    %c0_7 = arith.constant 0 : index
    %10 = vector.load %arg2[%c0_6, %c0_7] : memref<8x32xf32, #tpu.memory_space<vmem>>, vector<8x32xf32>
    %11 = arith.truncf %10 : vector<8x32xf32> to vector<8x32xbf16>
    %c0_8 = arith.constant 0 : index
    %c0_9 = arith.constant 0 : index
    %12 = vector.load %arg5[%c0_8, %c0_9] : memref<32x32xbf16, #tpu.memory_space<vmem>>, vector<32x32xbf16>
    %cst_10 = arith.constant dense<0.000000e+00> : vector<8x32xf32>
    %13 = tpu.matmul %11, %12, %cst_10 {dimension_numbers = #tpu.dot_dimension_numbers<[1], [0], [0], [1], [0, 0, 1, 1], [], []>} : vector<8x32xbf16>, vector<32x32xbf16>, vector<8x32xf32> -> vector<8x32xf32>
    %c0_11 = arith.constant 0 : index
    %c0_12 = arith.constant 0 : index
    %14 = vector.load %arg6[%c0_11, %c0_12] : memref<1x32xf32, #tpu.memory_space<vmem>>, vector<1x32xf32>
    %15 = vector.broadcast %14 : vector<1x32xf32> to vector<8x32xf32>
    %16 = arith.addf %13, %15 : vector<8x32xf32>
    %17 = math.tanh %16 : vector<8x32xf32>
    %18 = vector.shape_cast %17 : vector<8x32xf32> to vector<8x1x32xf32>
    %19 = vector.broadcast %18 : vector<8x1x32xf32> to vector<8x32x32xf32>
    %20 = arith.addf %9, %19 : vector<8x32x32xf32>
    %cst_13 = arith.constant 0.000000e+00 : f32
    %21 = vector.broadcast %cst_13 : f32 to vector<8x32x32xf32>
    %22 = arith.maximumf %20, %21 : vector<8x32x32xf32>
    %c0_14 = arith.constant 0 : index
    %c0_15 = arith.constant 0 : index
    %23 = vector.load %arg7[%c0_14, %c0_15] : memref<1x32xf32, #tpu.memory_space<vmem>>, vector<1x32xf32>
    %24 = vector.shape_cast %23 : vector<1x32xf32> to vector<1x1x32xf32>
    %25 = vector.broadcast %24 : vector<1x1x32xf32> to vector<8x32x32xf32>
    %26 = arith.mulf %22, %25 : vector<8x32x32xf32>
    %cst_16 = arith.constant dense<0.000000e+00> : vector<8x32xf32>
    %27 = vector.multi_reduction <add>, %26, %cst_16 [2] : vector<8x32x32xf32> to vector<8x32xf32>
    %28 = tpu.iota {dimensions = array<i32: 1>} : vector<8x32xi32>
    %c20_i32 = arith.constant 20 : i32
    %29 = vector.broadcast %c20_i32 : i32 to vector<8x32xi32>
    %30 = arith.cmpi slt, %28, %29 : vector<8x32xi32>
    %cst_17 = arith.constant 0xFF800000 : f32
    %31 = vector.broadcast %cst_17 : f32 to vector<8x32xf32>
    %32 = arith.select %30, %27, %31 : vector<8x32xi1>, vector<8x32xf32>
    %cst_18 = arith.constant dense<0xFF800000> : vector<8xf32>
    %33 = vector.multi_reduction <maximumf>, %32, %cst_18 [1] : vector<8x32xf32> to vector<8xf32>
    %34 = vector.shape_cast %33 : vector<8xf32> to vector<8x1xf32>
    %35 = vector.broadcast %34 : vector<8x1xf32> to vector<8x32xf32>
    %36 = arith.subf %32, %35 : vector<8x32xf32>
    %37 = math.exp %36 : vector<8x32xf32>
    %cst_19 = arith.constant dense<0.000000e+00> : vector<8xf32>
    %38 = vector.multi_reduction <add>, %37, %cst_19 [1] : vector<8x32xf32> to vector<8xf32>
    %39 = vector.shape_cast %38 : vector<8xf32> to vector<8x1xf32>
    %40 = tpu.reciprocal %39 {approx = true} : vector<8x1xf32> -> vector<8x1xf32>
    %41 = vector.broadcast %40 : vector<8x1xf32> to vector<8x32xf32>
    %42 = arith.mulf %37, %41 : vector<8x32xf32>
    %43 = vector.shape_cast %42 : vector<8x32xf32> to vector<8x1x32xf32>
    %44 = arith.truncf %43 : vector<8x1x32xf32> to vector<8x1x32xbf16>
    "tpu.trace_start"() <{level = 10 : i32, message = "bqn,bne->bqe"}> : () -> ()
    %cst_20 = arith.constant dense<0.000000e+00> : vector<8x1x32xf32>
    %45 = tpu.matmul %44, %1, %cst_20 {dimension_numbers = #tpu.dot_dimension_numbers<[2], [1], [1], [2], [0, 0, 0, 1, 1, 2], [0], [0]>} : vector<8x1x32xbf16>, vector<8x32x32xbf16>, vector<8x1x32xf32> -> vector<8x1x32xf32>
    "tpu.trace_stop"() : () -> ()
    %46 = vector.shape_cast %45 : vector<8x1x32xf32> to vector<8x32xf32>
    %c0_21 = arith.constant 0 : index
    %c0_22 = arith.constant 0 : index
    %47 = vector.load %arg8[%c0_21, %c0_22] : memref<8x32xf32, #tpu.memory_space<vmem>>, vector<8x32xf32>
    tpu.vector_store %arg8[%c0_21, %c0_22], %46 {strides = array<i32>} : memref<8x32xf32, #tpu.memory_space<vmem>>, vector<8x32xf32>,
    %c0_23 = arith.constant 0 : index
    %c0_24 = arith.constant 0 : index
    %48 = vector.load %arg9[%c0_23, %c0_24] : memref<8x32xf32, #tpu.memory_space<vmem>>, vector<8x32xf32>
    tpu.vector_store %arg9[%c0_23, %c0_24], %42 {strides = array<i32>} : memref<8x32xf32, #tpu.memory_space<vmem>>, vector<8x32xf32>,
    return
  }
  func.func @transform_0(%arg0: i32) -> (i32, i32, i32) {
    %c0_i32 = arith.constant 0 : i32
    %c0_i32_0 = arith.constant 0 : i32
    %c0_i32_1 = arith.constant 0 : i32
    return %arg0, %c0_i32, %c0_i32_0 : i32, i32, i32
  }
  func.func @transform_1(%arg0: i32) -> (i32, i32) {
    %c0_i32 = arith.constant 0 : i32
    %c0_i32_0 = arith.constant 0 : i32
    return %arg0, %c0_i32 : i32, i32
  }
  func.func @transform_2(%arg0: i32) -> (i32, i32) {
    %c0_i32 = arith.constant 0 : i32
    %c0_i32_0 = arith.constant 0 : i32
    %c0_i32_1 = arith.constant 0 : i32
    return %c0_i32, %c0_i32_0 : i32, i32
  }
  func.func @transform_3(%arg0: i32) -> (i32, i32) {
    %c0_i32 = arith.constant 0 : i32
    %c0_i32_0 = arith.constant 0 : i32
    %c0_i32_1 = arith.constant 0 : i32
    return %c0_i32, %c0_i32_0 : i32, i32
  }
  func.func @transform_4(%arg0: i32) -> (i32, i32) {
    %c0_i32 = arith.constant 0 : i32
    %c0_i32_0 = arith.constant 0 : i32
    %c0_i32_1 = arith.constant 0 : i32
    return %c0_i32, %c0_i32_0 : i32, i32
  }
  func.func @transform_5(%arg0: i32) -> (i32, i32) {
    %c0_i32 = arith.constant 0 : i32
    %c0_i32_0 = arith.constant 0 : i32
    %c0_i32_1 = arith.constant 0 : i32
    return %c0_i32, %c0_i32_0 : i32, i32
  }
  func.func @transform_6(%arg0: i32) -> (i32, i32) {
    %c0_i32 = arith.constant 0 : i32
    %c0_i32_0 = arith.constant 0 : i32
    %c0_i32_1 = arith.constant 0 : i32
    return %c0_i32, %c0_i32_0 : i32, i32
  }
  func.func @transform_7(%arg0: i32) -> (i32, i32) {
    %c0_i32 = arith.constant 0 : i32
    %c0_i32_0 = arith.constant 0 : i32
    return %arg0, %c0_i32 : i32, i32
  }
  func.func @transform_8(%arg0: i32) -> (i32, i32) {
    %c0_i32 = arith.constant 0 : i32
    %c0_i32_0 = arith.constant 0 : i32
    return %arg0, %c0_i32 : i32, i32
  }
}

</mosaic_0001>

<llo_original>
// kernel: tpu_custom_call.1
$region0: #{tpu_custom_call.1}
  #allocation0 [shape = 'u32[]', space=smem, size = 0x4, offset = 0x4, fixed_abs, tag = 'smem constant byte address 0x4 - core index']
  #allocation1 [shape = 'u32[72,128]{1,0:T(1,128)}', space=vmem, size = 0x9000, scoped, tag = 'internal scratch']
  %s0 = inlined_call_operand.hbm [shape: f32[16,32,32], index: 0, kind: input, shape index: {}]
  %s1 = inlined_call_operand.hbm [shape: f32[16,32], index: 1, kind: input, shape index: {}]
  %s2 = inlined_call_operand.hbm [shape: bf16[32,32], index: 2, kind: input, shape index: {}]
  %s3 = inlined_call_operand.vmem [shape: f32[1,32], index: 3, kind: input, shape index: {}]
  %s4 = inlined_call_operand.hbm [shape: bf16[32,32], index: 4, kind: input, shape index: {}]
  %s5 = inlined_call_operand.vmem [shape: f32[1,32], index: 5, kind: input, shape index: {}]
  %s6 = inlined_call_operand.vmem [shape: f32[1,32], index: 6, kind: input, shape index: {}]
  %s7 = inlined_call_operand.hbm [shape: f32[16,32], index: 7, kind: output, shape index: {0}]
  %s8 = inlined_call_operand.hbm [shape: f32[16,32], index: 8, kind: output, shape index: {1}]
  %9 = xla_tuple %s7, %s8
  %s10 = sld [smem:[#allocation0]]
  $region85: #{tpu_custom_call.1} parent=0
    _
  %s12 = ssub.s32 1, %s10
  %s13 = scalar_select 0, %s12, %s10
  $region1: #{tpu_custom_call.1} parent=0
    #allocation2 [shape = 'u8[262144]{0}', space=vmem, size = 0x40000, scoped, tag = 'input window, operand 0']
    #allocation3 [shape = 's32[2]{0}', space=sflag, size = 0x8, scoped, tag = 'scoped memory for tpu_custom_call.1']
    #allocation4 [shape = 's32[2]{0}', space=sflag, size = 0x8, scoped, tag = 'scoped memory for tpu_custom_call.1']
    #allocation5 [shape = 'u8[8192]{0}', space=vmem, size = 0x2000, scoped, tag = 'input window, operand 1']
    #allocation6 [shape = 's32[2]{0}', space=sflag, size = 0x8, scoped, tag = 'scoped memory for tpu_custom_call.1']
    #allocation7 [shape = 'u8[8192]{0}', space=vmem, size = 0x2000, scoped, tag = 'input window, operand 2, single buffered']
    #allocation8 [shape = 'u8[8192]{0}', space=vmem, size = 0x2000, scoped, tag = 'input window, operand 4, single buffered']
    #allocation9 [shape = 's32[1]{0}', space=sflag, size = 0x4, scoped, tag = 'scoped memory for tpu_custom_call.1']
    #allocation10 [shape = 'u8[8192]{0}', space=vmem, size = 0x2000, scoped, tag = 'output window, operand 0']
    #allocation11 [shape = 'u8[8192]{0}', space=vmem, size = 0x2000, scoped, tag = 'output window, operand 1']
    #allocation12 [shape = 's32[2]{0}', space=sflag, size = 0x8, scoped, tag = 'scoped memory for tpu_custom_call.1']
    %14 = vsyncpa [#allocation3], 0
    %s15 = scalar_lea.sflag [#allocation3], 1
    %16 = vsyncpa %s15, 0
    %17 = vsyncpa [#allocation6], 0
    %s18 = scalar_lea.sflag [#allocation6], 1
    %19 = vsyncpa %s18, 0
    %20 = vsyncpa [#allocation9], 0
    %21 = vsyncpa [#allocation4], 0
    %s22 = scalar_lea.sflag [#allocation4], 1
    %23 = vsyncpa %s22, 0
    %24 = vsyncpa [#allocation12], 0
    %s25 = scalar_lea.sflag [#allocation12], 1
    %26 = vsyncpa %s25, 0
    loop: start=0, step=1, limit=4
    $region2: #{tpu_custom_call.1} parent=1 // loop_pre_header
      _
    $region3: #{tpu_custom_call.1} parent=1 // loop_header
      %s28 = sphi 0, %s32
      %p29 = scmp.ge.s32.totalorder %s28, 4
      %s38 = sphi 0, %s40
      %s41 = sphi 0, %s38
      %s42 = sphi 0, %s41
      %s58 = sphi 0, %s42
      %s64 = sphi 0, %s66
      %s67 = sphi 0, %s64
      %s68 = sphi 0, %s67
      %s84 = sphi 0, %s68
      %s88 = sphi 0, %s88
      %s90 = sphi 0, %s88
      %s91 = sphi 0, %s90
      %s105 = sphi 0, %s91
      %s109 = sphi 0, %s109
      %s111 = sphi 0, %s109
      %s112 = sphi 0, %s111
      %s126 = sphi 0, %s112
      %s130 = sphi 0, %s130
      %s132 = sphi 0, %s130
      %s133 = sphi 0, %s132
      %s147 = sphi 0, %s133
      %s151 = sphi 0, %s151
      %s153 = sphi 0, %s151
      %s154 = sphi 0, %s153
      %s168 = sphi 0, %s154
      %s172 = sphi 0, %s172
      %s174 = sphi 0, %s172
      %s175 = sphi 0, %s174
      %s189 = sphi 0, %s175
      %s195 = sphi 0, %s197
      %s198 = sphi 0, %s195
      %s199 = sphi 0, %s198
      %s215 = sphi 0, %s199
      %s221 = sphi 0, %s223
      %s224 = sphi 0, %s221
      %s225 = sphi 0, %s224
      %s241 = sphi 0, %s225
    $region4: #{tpu_custom_call.1} parent=1 // loop_header_branch
      %31 = sbr.rel (%p29) target = $region8
    $region5: #{tpu_custom_call.1} parent=1 // loop_body
      %s33 = ssub.s32 %s28, 1
      %s34 = ssub.s32 %s28, 2
      %s35 = sadd.s32 %s28, 1
      %s36 = ssub.s32 %s28, %s35
      %p37 = scmp.eq.s32.totalorder %s36, 0
      %s39 = sadd.s32 %s38, 1
      %s40 = scalar_select %p37, %s38, %s39
      %p43 = pneg %p37
      %p44 = scmp.eq.s32.totalorder %s28, 1
      %p45 = por %p43, %p44
      %p46 = scmp.ne.s32.totalorder %s38, %s41
      %p47 = scmp.eq.s32.totalorder %s28, 0
      %p48 = por %p46, %p47
      %p49 = scmp.ne.s32.totalorder %s38, %s41
      %p50 = scmp.eq.s32.totalorder %s33, 1
      %p51 = por %p49, %p50
      %p52 = scmp.ne.s32.totalorder %s41, %s42
      %p53 = scmp.eq.s32.totalorder %s33, 0
      %p54 = por %p52, %p53
      %p55 = scmp.ne.s32.totalorder %s41, %s42
      %p56 = scmp.eq.s32.totalorder %s34, 1
      %p57 = por %p55, %p56
      %p59 = scmp.ne.s32.totalorder %s42, %s58
      %p60 = scmp.eq.s32.totalorder %s34, 0
      %p61 = por %p59, %p60
      %s62 = ssub.s32 %s28, %s35
      %p63 = scmp.eq.s32.totalorder %s62, 0
      %s65 = sadd.s32 %s64, 1
      %s66 = scalar_select %p63, %s64, %s65
      %p69 = pneg %p63
      %p70 = scmp.eq.s32.totalorder %s28, 1
      %p71 = por %p69, %p70
      %p72 = scmp.ne.s32.totalorder %s64, %s67
      %p73 = scmp.eq.s32.totalorder %s28, 0
      %p74 = por %p72, %p73
      %p75 = scmp.ne.s32.totalorder %s64, %s67
      %p76 = scmp.eq.s32.totalorder %s33, 1
      %p77 = por %p75, %p76
      %p78 = scmp.ne.s32.totalorder %s67, %s68
      %p79 = scmp.eq.s32.totalorder %s33, 0
      %p80 = por %p78, %p79
      %p81 = scmp.ne.s32.totalorder %s67, %s68
      %p82 = scmp.eq.s32.totalorder %s34, 1
      %p83 = por %p81, %p82
      %p85 = scmp.ne.s32.totalorder %s68, %s84
      %p86 = scmp.eq.s32.totalorder %s34, 0
      %p87 = por %p85, %p86
      %s89 = sadd.s32 %s88, 1
      %p92 = scmp.eq.s32.totalorder %s28, 1
      %p93 = scmp.ne.s32.totalorder %s88, %s90
      %p94 = scmp.eq.s32.totalorder %s28, 0
      %p95 = por %p93, %p94
      %p96 = scmp.ne.s32.totalorder %s88, %s90
      %p97 = scmp.eq.s32.totalorder %s33, 1
      %p98 = por %p96, %p97
      %p99 = scmp.ne.s32.totalorder %s90, %s91
      %p100 = scmp.eq.s32.totalorder %s33, 0
      %p101 = por %p99, %p100
      %p102 = scmp.ne.s32.totalorder %s90, %s91
      %p103 = scmp.eq.s32.totalorder %s34, 1
      %p104 = por %p102, %p103
      %p106 = scmp.ne.s32.totalorder %s91, %s105
      %p107 = scmp.eq.s32.totalorder %s34, 0
      %p108 = por %p106, %p107
      %s110 = sadd.s32 %s109, 1
      %p113 = scmp.eq.s32.totalorder %s28, 1
      %p114 = scmp.ne.s32.totalorder %s109, %s111
      %p115 = scmp.eq.s32.totalorder %s28, 0
      %p116 = por %p114, %p115
      %p117 = scmp.ne.s32.totalorder %s109, %s111
      %p118 = scmp.eq.s32.totalorder %s33, 1
      %p119 = por %p117, %p118
      %p120 = scmp.ne.s32.totalorder %s111, %s112
      %p121 = scmp.eq.s32.totalorder %s33, 0
      %p122 = por %p120, %p121
      %p123 = scmp.ne.s32.totalorder %s111, %s112
      %p124 = scmp.eq.s32.totalorder %s34, 1
      %p125 = por %p123, %p124
      %p127 = scmp.ne.s32.totalorder %s112, %s126
      %p128 = scmp.eq.s32.totalorder %s34, 0
      %p129 = por %p127, %p128
      %s131 = sadd.s32 %s130, 1
      %p134 = scmp.eq.s32.totalorder %s28, 1
      %p135 = scmp.ne.s32.totalorder %s130, %s132
      %p136 = scmp.eq.s32.totalorder %s28, 0
      %p137 = por %p135, %p136
      %p138 = scmp.ne.s32.totalorder %s130, %s132
      %p139 = scmp.eq.s32.totalorder %s33, 1
      %p140 = por %p138, %p139
      %p141 = scmp.ne.s32.totalorder %s132, %s133
      %p142 = scmp.eq.s32.totalorder %s33, 0
      %p143 = por %p141, %p142
      %p144 = scmp.ne.s32.totalorder %s132, %s133
      %p145 = scmp.eq.s32.totalorder %s34, 1
      %p146 = por %p144, %p145
      %p148 = scmp.ne.s32.totalorder %s133, %s147
      %p149 = scmp.eq.s32.totalorder %s34, 0
      %p150 = por %p148, %p149
      %s152 = sadd.s32 %s151, 1
      %p155 = scmp.eq.s32.totalorder %s28, 1
      %p156 = scmp.ne.s32.totalorder %s151, %s153
      %p157 = scmp.eq.s32.totalorder %s28, 0
      %p158 = por %p156, %p157
      %p159 = scmp.ne.s32.totalorder %s151, %s153
      %p160 = scmp.eq.s32.totalorder %s33, 1
      %p161 = por %p159, %p160
      %p162 = scmp.ne.s32.totalorder %s153, %s154
      %p163 = scmp.eq.s32.totalorder %s33, 0
      %p164 = por %p162, %p163
      %p165 = scmp.ne.s32.totalorder %s153, %s154
      %p166 = scmp.eq.s32.totalorder %s34, 1
      %p167 = por %p165, %p166
      %p169 = scmp.ne.s32.totalorder %s154, %s168
      %p170 = scmp.eq.s32.totalorder %s34, 0
      %p171 = por %p169, %p170
      %s173 = sadd.s32 %s172, 1
      %p176 = scmp.eq.s32.totalorder %s28, 1
      %p177 = scmp.ne.s32.totalorder %s172, %s174
      %p178 = scmp.eq.s32.totalorder %s28, 0
      %p179 = por %p177, %p178
      %p180 = scmp.ne.s32.totalorder %s172, %s174
      %p181 = scmp.eq.s32.totalorder %s33, 1
      %p182 = por %p180, %p181
      %p183 = scmp.ne.s32.totalorder %s174, %s175
      %p184 = scmp.eq.s32.totalorder %s33, 0
      %p185 = por %p183, %p184
      %p186 = scmp.ne.s32.totalorder %s174, %s175
      %p187 = scmp.eq.s32.totalorder %s34, 1
      %p188 = por %p186, %p187
      %p190 = scmp.ne.s32.totalorder %s175, %s189
      %p191 = scmp.eq.s32.totalorder %s34, 0
      %p192 = por %p190, %p191
      %s193 = ssub.s32 %s28, %s35
      %p194 = scmp.eq.s32.totalorder %s193, 0
      %s196 = sadd.s32 %s195, 1
      %s197 = scalar_select %p194, %s195, %s196
      %p200 = pneg %p194
      %p201 = scmp.eq.s32.totalorder %s28, 1
      %p202 = por %p200, %p201
      %p203 = scmp.ne.s32.totalorder %s195, %s198
      %p204 = scmp.eq.s32.totalorder %s28, 0
      %p205 = por %p203, %p204
      %p206 = scmp.ne.s32.totalorder %s195, %s198
      %p207 = scmp.eq.s32.totalorder %s33, 1
      %p208 = por %p206, %p207
      %p209 = scmp.ne.s32.totalorder %s198, %s199
      %p210 = scmp.eq.s32.totalorder %s33, 0
      %p211 = por %p209, %p210
      %p212 = scmp.ne.s32.totalorder %s198, %s199
      %p213 = scmp.eq.s32.totalorder %s34, 1
      %p214 = por %p212, %p213
      %p216 = scmp.ne.s32.totalorder %s199, %s215
      %p217 = scmp.eq.s32.totalorder %s34, 0
      %p218 = por %p216, %p217
      %s219 = ssub.s32 %s28, %s35
      %p220 = scmp.eq.s32.totalorder %s219, 0
      %s222 = sadd.s32 %s221, 1
      %s223 = scalar_select %p220, %s221, %s222
      %p226 = pneg %p220
      %p227 = scmp.eq.s32.totalorder %s28, 1
      %p228 = por %p226, %p227
      %p229 = scmp.ne.s32.totalorder %s221, %s224
      %p230 = scmp.eq.s32.totalorder %s28, 0
      %p231 = por %p229, %p230
      %p232 = scmp.ne.s32.totalorder %s221, %s224
      %p233 = scmp.eq.s32.totalorder %s33, 1
      %p234 = por %p232, %p233
      %p235 = scmp.ne.s32.totalorder %s224, %s225
      %p236 = scmp.eq.s32.totalorder %s33, 0
      %p237 = por %p235, %p236
      %p238 = scmp.ne.s32.totalorder %s224, %s225
      %p239 = scmp.eq.s32.totalorder %s34, 1
      %p240 = por %p238, %p239
      %p242 = scmp.ne.s32.totalorder %s225, %s241
      %p243 = scmp.eq.s32.totalorder %s34, 0
      %p244 = por %p242, %p243
      %p245 = scmp.le.s32.totalorder 1, %s28
      %p246 = scmp.lt.s32.totalorder %s28, 3
      %p247 = pnand %p245, %p246
      %p248 = pneg %p247
      // Predicated region
      $region9: #{tpu_custom_call.1} parent=5 // pred_check
        _
      $region10: #{tpu_custom_call.1} parent=5 // pred_check_branch
        %250 = sbr.rel (%p247) target = $region12
      $region11: #{tpu_custom_call.1} parent=5 // pred_region
        %s251 = ssub.s32 %s28, 1
        // Predicated region
        $region13: #{tpu_custom_call.1} parent=11 // pred_check
          %p252 = pneg %p101
        $region14: #{tpu_custom_call.1} parent=11 // pred_check_branch
          %254 = sbr.rel (%p252) target = $region16
        $region15: #{tpu_custom_call.1} parent=11 // pred_region
          %256 = vsyncadd [#allocation6], 0
          %s257 = sshll.u32 %s2, 4
          %s258 = int_to_ptr.hbm [resolvable:$true] %s257
          %s259 = sshll.u32 [#allocation7], 4
          %s260 = int_to_ptr.vmem [resolvable:$true] %s259
          %265 = dma.hbm_to_vmem [thread:$0]  %s258, 256, %s260, [#allocation6], 64, 64, 4
        $region16: #{tpu_custom_call.1} parent=11 // pred_fallthru
          _
        // Predicated region
        $region17: #{tpu_custom_call.1} parent=11 // pred_check
          %p266 = pneg %p122
        $region18: #{tpu_custom_call.1} parent=11 // pred_check_branch
          %268 = sbr.rel (%p266) target = $region20
        $region19: #{tpu_custom_call.1} parent=11 // pred_region
          _
        $region20: #{tpu_custom_call.1} parent=11 // pred_fallthru
          _
        // Predicated region
        $region21: #{tpu_custom_call.1} parent=11 // pred_check
          %p269 = pneg %p143
        $region22: #{tpu_custom_call.1} parent=11 // pred_check_branch
          %271 = sbr.rel (%p269) target = $region24
        $region23: #{tpu_custom_call.1} parent=11 // pred_region
          %273 = vsyncadd [#allocation9], 0
          %s274 = sshll.u32 %s4, 4
          %s275 = int_to_ptr.hbm [resolvable:$true] %s274
          %s276 = sshll.u32 [#allocation8], 4
          %s277 = int_to_ptr.vmem [resolvable:$true] %s276
          %282 = dma.hbm_to_vmem [thread:$0]  %s275, 256, %s277, [#allocation9], 64, 64, 4
        $region24: #{tpu_custom_call.1} parent=11 // pred_fallthru
          _
        // Predicated region
        $region25: #{tpu_custom_call.1} parent=11 // pred_check
          %p283 = pneg %p164
        $region26: #{tpu_custom_call.1} parent=11 // pred_check_branch
          %285 = sbr.rel (%p283) target = $region28
        $region27: #{tpu_custom_call.1} parent=11 // pred_region
          _
        $region28: #{tpu_custom_call.1} parent=11 // pred_fallthru
          _
        // Predicated region
        $region29: #{tpu_custom_call.1} parent=11 // pred_check
          %p286 = pneg %p185
        $region30: #{tpu_custom_call.1} parent=11 // pred_check_branch
          %288 = sbr.rel (%p286) target = $region32
        $region31: #{tpu_custom_call.1} parent=11 // pred_region
          _
        $region32: #{tpu_custom_call.1} parent=11 // pred_fallthru
          _
      $region12: #{tpu_custom_call.1} parent=5 // pred_fallthru
        _
      %p289 = scmp.lt.s32.totalorder %s28, 2
      // Predicated region
      $region33: #{tpu_custom_call.1} parent=5 // pred_check
        %p290 = pneg %p289
      $region34: #{tpu_custom_call.1} parent=5 // pred_check_branch
        %292 = sbr.rel (%p290) target = $region36
      $region35: #{tpu_custom_call.1} parent=5 // pred_region
        // Predicated region
        $region37: #{tpu_custom_call.1} parent=35 // pred_check
          %p293 = pneg %p48
        $region38: #{tpu_custom_call.1} parent=35 // pred_check_branch
          %295 = sbr.rel (%p293) target = $region40
        $region39: #{tpu_custom_call.1} parent=35 // pred_region
          %s296 = sand.u32 %s38, 1
          %s297 = scalar_lea.sflag [#allocation3], %s296
          %s298 = sand.u32 %s38, 1
          %s299 = smul.addr %s298, 256
          %s300 = scalar_lea.vmem [#allocation2], %s299
          %s301 = smul.u32 8, %s28
          %303 = vsyncadd %s297, 0
          %s304 = smul.addr %s301, 4
          %s305 = smul.addr %s304, 8
          %s306 = scalar_lea.hbm %s0, %s305
          %s307 = sshll.u32 %s306, 4
          %s308 = int_to_ptr.hbm [resolvable:$true] %s307
          %s309 = sshll.u32 %s300, 4
          %s310 = int_to_ptr.vmem [resolvable:$true] %s309
          %315 = dma.hbm_to_vmem [thread:$0]  %s308, 4096, %s310, %s297, 128, 128, 8
        $region40: #{tpu_custom_call.1} parent=35 // pred_fallthru
          _
        // Predicated region
        $region41: #{tpu_custom_call.1} parent=35 // pred_check
          %p316 = pneg %p74
        $region42: #{tpu_custom_call.1} parent=35 // pred_check_branch
          %318 = sbr.rel (%p316) target = $region44
        $region43: #{tpu_custom_call.1} parent=35 // pred_region
          %s319 = sand.u32 %s28, 1
          %s320 = scalar_lea.sflag [#allocation6], %s319
          %s321 = sand.u32 %s64, 1
          %s322 = smul.addr %s321, 8
          %s323 = scalar_lea.vmem [#allocation5], %s322
          %325 = vsyncadd %s320, 0
          %s326 = smul.addr %s28, 8
          %s327 = scalar_lea.hbm %s1, %s326
          %s329 = sshll.u32 %s327, 4
          %s330 = int_to_ptr.hbm [resolvable:$true] %s329
          %s331 = sshll.u32 %s323, 4
          %s332 = int_to_ptr.vmem [resolvable:$true] %s331
          %334 = dma.hbm_to_vmem [thread:$0]  %s330, 128, %s332, %s320
        $region44: #{tpu_custom_call.1} parent=35 // pred_fallthru
          _
      $region36: #{tpu_custom_call.1} parent=5 // pred_fallthru
        _
      %p335 = scmp.le.s32.totalorder 1, %s28
      %p336 = scmp.lt.s32.totalorder %s28, 3
      %p337 = pnand %p335, %p336
      %p338 = pneg %p337
      // Predicated region
      $region45: #{tpu_custom_call.1} parent=5 // pred_check
        _
      $region46: #{tpu_custom_call.1} parent=5 // pred_check_branch
        %340 = sbr.rel (%p337) target = $region48
      $region47: #{tpu_custom_call.1} parent=5 // pred_region
        %s341 = ssub.s32 %s28, 1
        %s342 = sand.u32 %s41, 1
        %s343 = scalar_lea.sflag [#allocation3], %s342
        %s344 = sand.u32 %s41, 1
        %s345 = smul.addr %s344, 256
        %s346 = scalar_lea.vmem [#allocation2], %s345
        // Predicated region
        $region49: #{tpu_custom_call.1} parent=47 // pred_check
          %p347 = pneg %p54
        $region50: #{tpu_custom_call.1} parent=47 // pred_check_branch
          %349 = sbr.rel (%p347) target = $region52
        $region51: #{tpu_custom_call.1} parent=47 // pred_region
          %351 = dma.done %s343, 4096
        $region52: #{tpu_custom_call.1} parent=47 // pred_fallthru
          _
        %s352 = sand.u32 %s33, 1
        %s353 = scalar_lea.sflag [#allocation6], %s352
        %s354 = sand.u32 %s67, 1
        %s355 = smul.addr %s354, 8
        %s356 = scalar_lea.vmem [#allocation5], %s355
        // Predicated region
        $region53: #{tpu_custom_call.1} parent=47 // pred_check
          %p357 = pneg %p80
        $region54: #{tpu_custom_call.1} parent=47 // pred_check_branch
          %359 = sbr.rel (%p357) target = $region56
        $region55: #{tpu_custom_call.1} parent=47 // pred_region
          %361 = dma.done %s353, 128
        $region56: #{tpu_custom_call.1} parent=47 // pred_fallthru
          _
        // Predicated region
        $region57: #{tpu_custom_call.1} parent=47 // pred_check
          %p362 = pneg %p101
        $region58: #{tpu_custom_call.1} parent=47 // pred_check_branch
          %364 = sbr.rel (%p362) target = $region60
        $region59: #{tpu_custom_call.1} parent=47 // pred_region
          %366 = dma.done [#allocation6], 256
        $region60: #{tpu_custom_call.1} parent=47 // pred_fallthru
          _
        // Predicated region
        $region61: #{tpu_custom_call.1} parent=47 // pred_check
          %p367 = pneg %p143
        $region62: #{tpu_custom_call.1} parent=47 // pred_check_branch
          %369 = sbr.rel (%p367) target = $region64
        $region63: #{tpu_custom_call.1} parent=47 // pred_region
          %371 = dma.done [#allocation9], 256
        $region64: #{tpu_custom_call.1} parent=47 // pred_fallthru
          _
        %s372 = sand.u32 %s41, 1
        %s373 = scalar_lea.sflag [#allocation3], %s372
        %s374 = sand.u32 %s41, 1
        %s375 = smul.addr %s374, 256
        %s376 = scalar_lea.vmem [#allocation2], %s375
        %p377 = pneg %p54
        %p378 = pneg %p51
        %s379 = sand.u32 %s33, 1
        %s380 = scalar_lea.sflag [#allocation6], %s379
        %s381 = sand.u32 %s67, 1
        %s382 = smul.addr %s381, 8
        %s383 = scalar_lea.vmem [#allocation5], %s382
        %p384 = pneg %p80
        %p385 = pneg %p77
        %p386 = pneg %p101
        %p387 = pneg %p98
        %p388 = pneg %p122
        %p389 = pneg %p119
        %p390 = pneg %p143
        %p391 = pneg %p140
        %p392 = pneg %p164
        %p393 = pneg %p161
        %p394 = pneg %p185
        %p395 = pneg %p182
        %p396 = pneg %p211
        %p397 = pneg %p208
        %s398 = sand.u32 %s198, 1
        %s399 = scalar_lea.sflag [#allocation4], %s398
        %s400 = sand.u32 %s198, 1
        %s401 = smul.addr %s400, 8
        %s402 = scalar_lea.vmem [#allocation10], %s401
        %p403 = pneg %p237
        %p404 = pneg %p234
        %s405 = sand.u32 %s224, 1
        %s406 = scalar_lea.sflag [#allocation12], %s405
        %s407 = sand.u32 %s224, 1
        %s408 = smul.addr %s407, 8
        %s409 = scalar_lea.vmem [#allocation11], %s408
        %s410 = smul.u32 8, %s33
        %v412 = vld [vmem:[%s346] sm:$0xff]
        %v413 = vld [vmem:[%s346 + $0x8] sm:$0xff]
        %v414 = vld [vmem:[%s346 + $0x10] sm:$0xff]
        %v415 = vld [vmem:[%s346 + $0x18] sm:$0xff]
        %v416 = vld [vmem:[%s346 + $0x20] sm:$0xff]
        %v417 = vld [vmem:[%s346 + $0x28] sm:$0xff]
        %v418 = vld [vmem:[%s346 + $0x30] sm:$0xff]
        %v419 = vld [vmem:[%s346 + $0x38] sm:$0xff]
        %v420 = vld [vmem:[%s346 + $0x40] sm:$0xff]
        %v421 = vld [vmem:[%s346 + $0x48] sm:$0xff]
        %v422 = vld [vmem:[%s346 + $0x50] sm:$0xff]
        %v423 = vld [vmem:[%s346 + $0x58] sm:$0xff]
        %v424 = vld [vmem:[%s346 + $0x60] sm:$0xff]
        %v425 = vld [vmem:[%s346 + $0x68] sm:$0xff]
        %v426 = vld [vmem:[%s346 + $0x70] sm:$0xff]
        %v427 = vld [vmem:[%s346 + $0x78] sm:$0xff]
        %v428 = vld [vmem:[%s346 + $0x80] sm:$0xff]
        %v429 = vld [vmem:[%s346 + $0x88] sm:$0xff]
        %v430 = vld [vmem:[%s346 + $0x90] sm:$0xff]
        %v431 = vld [vmem:[%s346 + $0x98] sm:$0xff]
        %v432 = vld [vmem:[%s346 + $0xa0] sm:$0xff]
        %v433 = vld [vmem:[%s346 + $0xa8] sm:$0xff]
        %v434 = vld [vmem:[%s346 + $0xb0] sm:$0xff]
        %v435 = vld [vmem:[%s346 + $0xb8] sm:$0xff]
        %v436 = vld [vmem:[%s346 + $0xc0] sm:$0xff]
        %v437 = vld [vmem:[%s346 + $0xc8] sm:$0xff]
        %v438 = vld [vmem:[%s346 + $0xd0] sm:$0xff]
        %v439 = vld [vmem:[%s346 + $0xd8] sm:$0xff]
        %v440 = vld [vmem:[%s346 + $0xe0] sm:$0xff]
        %v441 = vld [vmem:[%s346 + $0xe8] sm:$0xff]
        %v442 = vld [vmem:[%s346 + $0xf0] sm:$0xff]
        %v443 = vld [vmem:[%s346 + $0xf8] sm:$0xff]
        %v444 = vpack.c.bf16 %v412, %v412
        %v445 = vpack.c.bf16 %v413, %v413
        %v446 = vpack.c.bf16 %v414, %v414
        %v447 = vpack.c.bf16 %v415, %v415
        %v448 = vpack.c.bf16 %v416, %v416
        %v449 = vpack.c.bf16 %v417, %v417
        %v450 = vpack.c.bf16 %v418, %v418
        %v451 = vpack.c.bf16 %v419, %v419
        %v452 = vpack.c.bf16 %v420, %v420
        %v453 = vpack.c.bf16 %v421, %v421
        %v454 = vpack.c.bf16 %v422, %v422
        %v455 = vpack.c.bf16 %v423, %v423
        %v456 = vpack.c.bf16 %v424, %v424
        %v457 = vpack.c.bf16 %v425, %v425
        %v458 = vpack.c.bf16 %v426, %v426
        %v459 = vpack.c.bf16 %v427, %v427
        %v460 = vpack.c.bf16 %v428, %v428
        %v461 = vpack.c.bf16 %v429, %v429
        %v462 = vpack.c.bf16 %v430, %v430
        %v463 = vpack.c.bf16 %v431, %v431
        %v464 = vpack.c.bf16 %v432, %v432
        %v465 = vpack.c.bf16 %v433, %v433
        %v466 = vpack.c.bf16 %v434, %v434
        %v467 = vpack.c.bf16 %v435, %v435
        %v468 = vpack.c.bf16 %v436, %v436
        %v469 = vpack.c.bf16 %v437, %v437
        %v470 = vpack.c.bf16 %v438, %v438
        %v471 = vpack.c.bf16 %v439, %v439
        %v472 = vpack.c.bf16 %v440, %v440
        %v473 = vpack.c.bf16 %v441, %v441
        %v474 = vpack.c.bf16 %v442, %v442
        %v475 = vpack.c.bf16 %v443, %v443
        %v476 = vld [vmem:[#allocation7] sm:$0xf]
        %v477 = vld [vmem:[#allocation7 + $0x4] sm:$0xf]
        %v478 = vld [vmem:[#allocation7 + $0x8] sm:$0xf]
        %v479 = vld [vmem:[#allocation7 + $0xc] sm:$0xf]
        %v480 = vld [vmem:[%s3] sm:$0x1]
        %v482 = vperm.slane %v480, 0
        %v516 = vunpack.c.l.b16 %v444
        %v517 = vunpack.c.l.b16 %v445
        %v518 = vunpack.c.l.b16 %v446
        %v519 = vunpack.c.l.b16 %v447
        %v520 = vunpack.c.l.b16 %v448
        %v521 = vunpack.c.l.b16 %v449
        %v522 = vunpack.c.l.b16 %v450
        %v523 = vunpack.c.l.b16 %v451
        %v524 = vunpack.c.l.b16 %v452
        %v525 = vunpack.c.l.b16 %v453
        %v526 = vunpack.c.l.b16 %v454
        %v527 = vunpack.c.l.b16 %v455
        %v528 = vunpack.c.l.b16 %v456
        %v529 = vunpack.c.l.b16 %v457
        %v530 = vunpack.c.l.b16 %v458
        %v531 = vunpack.c.l.b16 %v459
        %v532 = vunpack.c.l.b16 %v460
        %v533 = vunpack.c.l.b16 %v461
        %v534 = vunpack.c.l.b16 %v462
        %v535 = vunpack.c.l.b16 %v463
        %v536 = vunpack.c.l.b16 %v464
        %v537 = vunpack.c.l.b16 %v465
        %v538 = vunpack.c.l.b16 %v466
        %v539 = vunpack.c.l.b16 %v467
        %v540 = vunpack.c.l.b16 %v468
        %v541 = vunpack.c.l.b16 %v469
        %v542 = vunpack.c.l.b16 %v470
        %v543 = vunpack.c.l.b16 %v471
        %v544 = vunpack.c.l.b16 %v472
        %v545 = vunpack.c.l.b16 %v473
        %v546 = vunpack.c.l.b16 %v474
        %v547 = vunpack.c.l.b16 %v475
        %v548 = vpack.c.b16 %v517, %v516
        %v549 = vpack.c.b16 %v519, %v518
        %v550 = vpack.c.b16 %v521, %v520
        %v551 = vpack.c.b16 %v523, %v522
        %v552 = vpack.c.b16 %v525, %v524
        %v553 = vpack.c.b16 %v527, %v526
        %v554 = vpack.c.b16 %v529, %v528
        %v555 = vpack.c.b16 %v531, %v530
        %v556 = vpack.c.b16 %v533, %v532
        %v557 = vpack.c.b16 %v535, %v534
        %v558 = vpack.c.b16 %v537, %v536
        %v559 = vpack.c.b16 %v539, %v538
        %v560 = vpack.c.b16 %v541, %v540
        %v561 = vpack.c.b16 %v543, %v542
        %v562 = vpack.c.b16 %v545, %v544
        %v563 = vpack.c.b16 %v547, %v546
        %v568 = vunpack.c.l.b16 %v476
        %v569 = vunpack.c.l.b16 %v477
        %v570 = vunpack.c.l.b16 %v478
        %v571 = vunpack.c.l.b16 %v479
        %v572 = vpack.c.b16 %v569, %v568
        %v573 = vpack.c.b16 %v571, %v570
        %vm576 = vcmask 261120
        %v578 = vsel %vm576, %v548, 0
        %v581 = vsel %vm576, %v549, 0
        %v584 = vsel %vm576, %v550, 0
        %v587 = vsel %vm576, %v551, 0
        %v590 = vsel %vm576, %v552, 0
        %v593 = vsel %vm576, %v553, 0
        %v596 = vsel %vm576, %v554, 0
        %v599 = vsel %vm576, %v555, 0
        %v602 = vsel %vm576, %v556, 0
        %v605 = vsel %vm576, %v557, 0
        %v608 = vsel %vm576, %v558, 0
        %v611 = vsel %vm576, %v559, 0
        %v614 = vsel %vm576, %v560, 0
        %v617 = vsel %vm576, %v561, 0
        %v620 = vsel %vm576, %v562, 0
        %v623 = vsel %vm576, %v563, 0
        %625 = vmatpush.bf16.msra.mxu0 0
        %626 = vmatpush.bf16.msra.mxu0 0
        %627 = vmatpush.bf16.msra.mxu0 0
        %628 = vmatpush.bf16.msra.mxu0 0
        %629 = vmatpush.bf16.msra.mxu0 0
        %630 = vmatpush.bf16.msra.mxu0 0
        %631 = vmatpush.bf16.msra.mxu0 %v573
        %632 = vmatpush.bf16.msra.mxu0 %v572
        %633 = vmatmul.bf16.gmra.mxu0 %v578
        %v634 = vpop.f32.mrf.mxu0
        %v635 = vadd.f32 %v482, %v634
        %v636 = vpop.f32.mrf.mxu0
        %v637 = vadd.f32 %v482, %v636
        %638 = vmatmul.bf16.gmra.mxu0 %v581
        %v639 = vpop.f32.mrf.mxu0
        %v640 = vadd.f32 %v482, %v639
        %v641 = vpop.f32.mrf.mxu0
        %v642 = vadd.f32 %v482, %v641
        %643 = vmatmul.bf16.gmra.mxu0 %v584
        %v644 = vpop.f32.mrf.mxu0
        %v645 = vadd.f32 %v482, %v644
        %v646 = vpop.f32.mrf.mxu0
        %v647 = vadd.f32 %v482, %v646
        %648 = vmatmul.bf16.gmra.mxu0 %v587
        %v649 = vpop.f32.mrf.mxu0
        %v650 = vadd.f32 %v482, %v649
        %v651 = vpop.f32.mrf.mxu0
        %v652 = vadd.f32 %v482, %v651
        %653 = vmatmul.bf16.gmra.mxu0 %v590
        %v654 = vpop.f32.mrf.mxu0
        %v655 = vadd.f32 %v482, %v654
        %v656 = vpop.f32.mrf.mxu0
        %v657 = vadd.f32 %v482, %v656
        %658 = vmatmul.bf16.gmra.mxu0 %v593
        %v659 = vpop.f32.mrf.mxu0
        %v660 = vadd.f32 %v482, %v659
        %v661 = vpop.f32.mrf.mxu0
        %v662 = vadd.f32 %v482, %v661
        %663 = vmatmul.bf16.gmra.mxu0 %v596
        %v664 = vpop.f32.mrf.mxu0
        %v665 = vadd.f32 %v482, %v664
        %v666 = vpop.f32.mrf.mxu0
        %v667 = vadd.f32 %v482, %v666
        %668 = vmatmul.bf16.gmra.mxu0 %v599
        %v669 = vpop.f32.mrf.mxu0
        %v670 = vadd.f32 %v482, %v669
        %v671 = vpop.f32.mrf.mxu0
        %v672 = vadd.f32 %v482, %v671
        %673 = vmatmul.bf16.gmra.mxu0 %v602
        %v674 = vpop.f32.mrf.mxu0
        %v675 = vadd.f32 %v482, %v674
        %v676 = vpop.f32.mrf.mxu0
        %v677 = vadd.f32 %v482, %v676
        %678 = vmatmul.bf16.gmra.mxu0 %v605
        %v679 = vpop.f32.mrf.mxu0
        %v680 = vadd.f32 %v482, %v679
        %v681 = vpop.f32.mrf.mxu0
        %v682 = vadd.f32 %v482, %v681
        %683 = vmatmul.bf16.gmra.mxu0 %v608
        %v684 = vpop.f32.mrf.mxu0
        %v685 = vadd.f32 %v482, %v684
        %v686 = vpop.f32.mrf.mxu0
        %v687 = vadd.f32 %v482, %v686
        %688 = vmatmul.bf16.gmra.mxu0 %v611
        %v689 = vpop.f32.mrf.mxu0
        %v690 = vadd.f32 %v482, %v689
        %v691 = vpop.f32.mrf.mxu0
        %v692 = vadd.f32 %v482, %v691
        %693 = vmatmul.bf16.gmra.mxu0 %v614
        %v694 = vpop.f32.mrf.mxu0
        %v695 = vadd.f32 %v482, %v694
        %v696 = vpop.f32.mrf.mxu0
        %v697 = vadd.f32 %v482, %v696
        %698 = vmatmul.bf16.gmra.mxu0 %v617
        %v699 = vpop.f32.mrf.mxu0
        %v700 = vadd.f32 %v482, %v699
        %v701 = vpop.f32.mrf.mxu0
        %v702 = vadd.f32 %v482, %v701
        %703 = vmatmul.bf16.gmra.mxu0 %v620
        %v704 = vpop.f32.mrf.mxu0
        %v705 = vadd.f32 %v482, %v704
        %v706 = vpop.f32.mrf.mxu0
        %v707 = vadd.f32 %v482, %v706
        %708 = vmatmul.bf16.gmra.mxu0 %v623
        %v709 = vpop.f32.mrf.mxu0
        %v710 = vadd.f32 %v482, %v709
        %v711 = vpop.f32.mrf.mxu0
        %v712 = vadd.f32 %v482, %v711
        %713 = vdwg.mxu0
        %v714 = vtanh.pop %v635
        %v715 = vtanh.pop %v637
        %v716 = vtanh.pop %v640
        %v717 = vtanh.pop %v642
        %v718 = vtanh.pop %v645
        %v719 = vtanh.pop %v647
        %v720 = vtanh.pop %v650
        %v721 = vtanh.pop %v652
        %v722 = vtanh.pop %v655
        %v723 = vtanh.pop %v657
        %v724 = vtanh.pop %v660
        %v725 = vtanh.pop %v662
        %v726 = vtanh.pop %v665
        %v727 = vtanh.pop %v667
        %v728 = vtanh.pop %v670
        %v729 = vtanh.pop %v672
        %v730 = vtanh.pop %v675
        %v731 = vtanh.pop %v677
        %v732 = vtanh.pop %v680
        %v733 = vtanh.pop %v682
        %v734 = vtanh.pop %v685
        %v735 = vtanh.pop %v687
        %v736 = vtanh.pop %v690
        %v737 = vtanh.pop %v692
        %v738 = vtanh.pop %v695
        %v739 = vtanh.pop %v697
        %v740 = vtanh.pop %v700
        %v741 = vtanh.pop %v702
        %v742 = vtanh.pop %v705
        %v743 = vtanh.pop %v707
        %v744 = vtanh.pop %v710
        %v745 = vtanh.pop %v712
        %v746 = vld [vmem:[%s356] sm:$0xff]
        %v747 = vpack.c.bf16 %v746, %v746
        %v748 = vld [vmem:[#allocation8] sm:$0xf]
        %v749 = vld [vmem:[#allocation8 + $0x4] sm:$0xf]
        %v750 = vld [vmem:[#allocation8 + $0x8] sm:$0xf]
        %v751 = vld [vmem:[#allocation8 + $0xc] sm:$0xf]
        %v752 = vld [vmem:[%s5] sm:$0x1]
        %v754 = vperm.slane %v752, 0
        %v760 = vunpack.c.l.b16 %v748
        %v761 = vunpack.c.l.b16 %v749
        %v762 = vunpack.c.l.b16 %v750
        %v763 = vunpack.c.l.b16 %v751
        %v764 = vpack.c.b16 %v761, %v760
        %v765 = vpack.c.b16 %v763, %v762
        %v769 = vsel %vm576, %v747, 0
        %771 = vmatpush.bf16.msra.mxu0 0
        %772 = vmatpush.bf16.msra.mxu0 0
        %773 = vmatpush.bf16.msra.mxu0 0
        %774 = vmatpush.bf16.msra.mxu0 0
        %775 = vmatpush.bf16.msra.mxu0 0
        %776 = vmatpush.bf16.msra.mxu0 0
        %777 = vmatpush.bf16.msra.mxu0 %v765
        %778 = vmatpush.bf16.msra.mxu0 %v764
        %779 = vmatmul.bf16.gmra.mxu0 %v769
        %v780 = vpop.f32.mrf.mxu0
        %v781 = vadd.f32 %v754, %v780
        %v782 = vpop.f32.mrf.mxu0
        %783 = vdwg.mxu0
        %v784 = vtanh.pop %v781
        %v786 = vrot.slane %v784, 1
        %v787 = vrot.slane %v784, 2
        %v788 = vrot.slane %v784, 3
        %v789 = vrot.slane %v784, 4
        %v790 = vrot.slane %v784, 5
        %v791 = vrot.slane %v784, 6
        %v792 = vrot.slane %v784, 7
        %v793 = vperm.slane %v784, 0
        %v794 = vperm.slane %v786, 0
        %v795 = vperm.slane %v787, 0
        %v796 = vperm.slane %v788, 0
        %v797 = vperm.slane %v789, 0
        %v798 = vperm.slane %v790, 0
        %v799 = vperm.slane %v791, 0
        %v800 = vperm.slane %v792, 0
        %v809 = vadd.f32 %v714, %v793
        %v810 = vadd.f32 %v715, %v793
        %v811 = vadd.f32 %v716, %v793
        %v812 = vadd.f32 %v717, %v793
        %v813 = vadd.f32 %v718, %v794
        %v814 = vadd.f32 %v719, %v794
        %v815 = vadd.f32 %v720, %v794
        %v816 = vadd.f32 %v721, %v794
        %v817 = vadd.f32 %v722, %v795
        %v818 = vadd.f32 %v723, %v795
        %v819 = vadd.f32 %v724, %v795
        %v820 = vadd.f32 %v725, %v795
        %v821 = vadd.f32 %v726, %v796
        %v822 = vadd.f32 %v727, %v796
        %v823 = vadd.f32 %v728, %v796
        %v824 = vadd.f32 %v729, %v796
        %v825 = vadd.f32 %v730, %v797
        %v826 = vadd.f32 %v731, %v797
        %v827 = vadd.f32 %v732, %v797
        %v828 = vadd.f32 %v733, %v797
        %v829 = vadd.f32 %v734, %v798
        %v830 = vadd.f32 %v735, %v798
        %v831 = vadd.f32 %v736, %v798
        %v832 = vadd.f32 %v737, %v798
        %v833 = vadd.f32 %v738, %v799
        %v834 = vadd.f32 %v739, %v799
        %v835 = vadd.f32 %v740, %v799
        %v836 = vadd.f32 %v741, %v799
        %v837 = vadd.f32 %v742, %v800
        %v838 = vadd.f32 %v743, %v800
        %v839 = vadd.f32 %v744, %v800
        %v840 = vadd.f32 %v745, %v800
        %v841 = vmax.f32 %v809, 0.0
        %v842 = vmax.f32 %v810, 0.0
        %v843 = vmax.f32 %v811, 0.0
        %v844 = vmax.f32 %v812, 0.0
        %v845 = vmax.f32 %v813, 0.0
        %v846 = vmax.f32 %v814, 0.0
        %v847 = vmax.f32 %v815, 0.0
        %v848 = vmax.f32 %v816, 0.0
        %v849 = vmax.f32 %v817, 0.0
        %v850 = vmax.f32 %v818, 0.0
        %v851 = vmax.f32 %v819, 0.0
        %v852 = vmax.f32 %v820, 0.0
        %v853 = vmax.f32 %v821, 0.0
        %v854 = vmax.f32 %v822, 0.0
        %v855 = vmax.f32 %v823, 0.0
        %v856 = vmax.f32 %v824, 0.0
        %v857 = vmax.f32 %v825, 0.0
        %v858 = vmax.f32 %v826, 0.0
        %v859 = vmax.f32 %v827, 0.0
        %v860 = vmax.f32 %v828, 0.0
        %v861 = vmax.f32 %v829, 0.0
        %v862 = vmax.f32 %v830, 0.0
        %v863 = vmax.f32 %v831, 0.0
        %v864 = vmax.f32 %v832, 0.0
        %v865 = vmax.f32 %v833, 0.0
        %v866 = vmax.f32 %v834, 0.0
        %v867 = vmax.f32 %v835, 0.0
        %v868 = vmax.f32 %v836, 0.0
        %v869 = vmax.f32 %v837, 0.0
        %v870 = vmax.f32 %v838, 0.0
        %v871 = vmax.f32 %v839, 0.0
        %v872 = vmax.f32 %v840, 0.0
        %v873 = vld [vmem:[%s6] sm:$0x1]
        %v875 = vperm.slane %v873, 0
        %v877 = vmul.f32 %v841, %v875
        %v878 = vmul.f32 %v842, %v875
        %v879 = vmul.f32 %v843, %v875
        %v880 = vmul.f32 %v844, %v875
        %v881 = vmul.f32 %v845, %v875
        %v882 = vmul.f32 %v846, %v875
        %v883 = vmul.f32 %v847, %v875
        %v884 = vmul.f32 %v848, %v875
        %v885 = vmul.f32 %v849, %v875
        %v886 = vmul.f32 %v850, %v875
        %v887 = vmul.f32 %v851, %v875
        %v888 = vmul.f32 %v852, %v875
        %v889 = vmul.f32 %v853, %v875
        %v890 = vmul.f32 %v854, %v875
        %v891 = vmul.f32 %v855, %v875
        %v892 = vmul.f32 %v856, %v875
        %v893 = vmul.f32 %v857, %v875
        %v894 = vmul.f32 %v858, %v875
        %v895 = vmul.f32 %v859, %v875
        %v896 = vmul.f32 %v860, %v875
        %v897 = vmul.f32 %v861, %v875
        %v898 = vmul.f32 %v862, %v875
        %v899 = vmul.f32 %v863, %v875
        %v900 = vmul.f32 %v864, %v875
        %v901 = vmul.f32 %v865, %v875
        %v902 = vmul.f32 %v866, %v875
        %v903 = vmul.f32 %v867, %v875
        %v904 = vmul.f32 %v868, %v875
        %v905 = vmul.f32 %v869, %v875
        %v906 = vmul.f32 %v870, %v875
        %v907 = vmul.f32 %v871, %v875
        %v908 = vmul.f32 %v872, %v875
        %v909 = vsel %vm576, %v877, 0.0
        %910 = vadd.xlane.f32.xlu0 %v909
        %v911 = vpop.xlane.xlu0 %910
        %v912 = vsel %vm576, %v878, 0.0
        %913 = vadd.xlane.f32.xlu0 %v912
        %v914 = vpop.xlane.xlu0 %913
        %v915 = vsel %vm576, %v879, 0.0
        %916 = vadd.xlane.f32.xlu0 %v915
        %v917 = vpop.xlane.xlu0 %916
        %v918 = vsel %vm576, %v880, 0.0
        %919 = vadd.xlane.f32.xlu0 %v918
        %v920 = vpop.xlane.xlu0 %919
        %v921 = vsel %vm576, %v881, 0.0
        %922 = vadd.xlane.f32.xlu0 %v921
        %v923 = vpop.xlane.xlu0 %922
        %v924 = vsel %vm576, %v882, 0.0
        %925 = vadd.xlane.f32.xlu0 %v924
        %v926 = vpop.xlane.xlu0 %925
        %v927 = vsel %vm576, %v883, 0.0
        %928 = vadd.xlane.f32.xlu0 %v927
        %v929 = vpop.xlane.xlu0 %928
        %v930 = vsel %vm576, %v884, 0.0
        %931 = vadd.xlane.f32.xlu0 %v930
        %v932 = vpop.xlane.xlu0 %931
        %v933 = vsel %vm576, %v885, 0.0
        %934 = vadd.xlane.f32.xlu0 %v933
        %v935 = vpop.xlane.xlu0 %934
        %v936 = vsel %vm576, %v886, 0.0
        %937 = vadd.xlane.f32.xlu0 %v936
        %v938 = vpop.xlane.xlu0 %937
        %v939 = vsel %vm576, %v887, 0.0
        %940 = vadd.xlane.f32.xlu0 %v939
        %v941 = vpop.xlane.xlu0 %940
        %v942 = vsel %vm576, %v888, 0.0
        %943 = vadd.xlane.f32.xlu0 %v942
        %v944 = vpop.xlane.xlu0 %943
        %v945 = vsel %vm576, %v889, 0.0
        %946 = vadd.xlane.f32.xlu0 %v945
        %v947 = vpop.xlane.xlu0 %946
        %v948 = vsel %vm576, %v890, 0.0
        %949 = vadd.xlane.f32.xlu0 %v948
        %v950 = vpop.xlane.xlu0 %949
        %v951 = vsel %vm576, %v891, 0.0
        %952 = vadd.xlane.f32.xlu0 %v951
        %v953 = vpop.xlane.xlu0 %952
        %v954 = vsel %vm576, %v892, 0.0
        %955 = vadd.xlane.f32.xlu0 %v954
        %v956 = vpop.xlane.xlu0 %955
        %v957 = vsel %vm576, %v893, 0.0
        %958 = vadd.xlane.f32.xlu0 %v957
        %v959 = vpop.xlane.xlu0 %958
        %v960 = vsel %vm576, %v894, 0.0
        %961 = vadd.xlane.f32.xlu0 %v960
        %v962 = vpop.xlane.xlu0 %961
        %v963 = vsel %vm576, %v895, 0.0
        %964 = vadd.xlane.f32.xlu0 %v963
        %v965 = vpop.xlane.xlu0 %964
        %v966 = vsel %vm576, %v896, 0.0
        %967 = vadd.xlane.f32.xlu0 %v966
        %v968 = vpop.xlane.xlu0 %967
        %v969 = vsel %vm576, %v897, 0.0
        %970 = vadd.xlane.f32.xlu0 %v969
        %v971 = vpop.xlane.xlu0 %970
        %v972 = vsel %vm576, %v898, 0.0
        %973 = vadd.xlane.f32.xlu0 %v972
        %v974 = vpop.xlane.xlu0 %973
        %v975 = vsel %vm576, %v899, 0.0
        %976 = vadd.xlane.f32.xlu0 %v975
        %v977 = vpop.xlane.xlu0 %976
        %v978 = vsel %vm576, %v900, 0.0
        %979 = vadd.xlane.f32.xlu0 %v978
        %v980 = vpop.xlane.xlu0 %979
        %v981 = vsel %vm576, %v901, 0.0
        %982 = vadd.xlane.f32.xlu0 %v981
        %v983 = vpop.xlane.xlu0 %982
        %v984 = vsel %vm576, %v902, 0.0
        %985 = vadd.xlane.f32.xlu0 %v984
        %v986 = vpop.xlane.xlu0 %985
        %v987 = vsel %vm576, %v903, 0.0
        %988 = vadd.xlane.f32.xlu0 %v987
        %v989 = vpop.xlane.xlu0 %988
        %v990 = vsel %vm576, %v904, 0.0
        %991 = vadd.xlane.f32.xlu0 %v990
        %v992 = vpop.xlane.xlu0 %991
        %v993 = vsel %vm576, %v905, 0.0
        %994 = vadd.xlane.f32.xlu0 %v993
        %v995 = vpop.xlane.xlu0 %994
        %v996 = vsel %vm576, %v906, 0.0
        %997 = vadd.xlane.f32.xlu0 %v996
        %v998 = vpop.xlane.xlu0 %997
        %v999 = vsel %vm576, %v907, 0.0
        %1000 = vadd.xlane.f32.xlu0 %v999
        %v1001 = vpop.xlane.xlu0 %1000
        %v1002 = vsel %vm576, %v908, 0.0
        %1003 = vadd.xlane.f32.xlu0 %v1002
        %v1004 = vpop.xlane.xlu0 %1003
        %v1005 = vlaneseq
        %v1006 = vand.u32 %v1005, 127
        %vm1007 = vcmp.lt.s32.totalorder %v1006, 20
        %v1040 = vperm.slane %v911, %v1006
        %v1041 = vadd.s32 %v1006, 4294967288
        %v1042 = vperm.slane %v914, %v1041
        %vm1043 = vcmask 130112
        %v1044 = vsel %vm1043, %v1042, %v1040
        %v1045 = vadd.s32 %v1006, 4294967280
        %v1046 = vperm.slane %v917, %v1045
        %vm1047 = vcmask 195712
        %v1048 = vsel %vm1047, %v1046, %v1044
        %v1049 = vadd.s32 %v1006, 4294967272
        %v1050 = vperm.slane %v920, %v1049
        %vm1051 = vcmask 261312
        %v1052 = vsel %vm1051, %v1050, %v1048
        %v1053 = vperm.slane %v923, %v1006
        %v1054 = vperm.slane %v926, %v1041
        %v1055 = vsel %vm1043, %v1054, %v1053
        %v1056 = vperm.slane %v929, %v1045
        %v1057 = vsel %vm1047, %v1056, %v1055
        %v1058 = vperm.slane %v932, %v1049
        %v1059 = vsel %vm1051, %v1058, %v1057
        %v1060 = vperm.slane %v935, %v1006
        %v1061 = vperm.slane %v938, %v1041
        %v1062 = vsel %vm1043, %v1061, %v1060
        %v1063 = vperm.slane %v941, %v1045
        %v1064 = vsel %vm1047, %v1063, %v1062
        %v1065 = vperm.slane %v944, %v1049
        %v1066 = vsel %vm1051, %v1065, %v1064
        %v1067 = vperm.slane %v947, %v1006
        %v1068 = vperm.slane %v950, %v1041
        %v1069 = vsel %vm1043, %v1068, %v1067
        %v1070 = vperm.slane %v953, %v1045
        %v1071 = vsel %vm1047, %v1070, %v1069
        %v1072 = vperm.slane %v956, %v1049
        %v1073 = vsel %vm1051, %v1072, %v1071
        %v1074 = vperm.slane %v959, %v1006
        %v1075 = vperm.slane %v962, %v1041
        %v1076 = vsel %vm1043, %v1075, %v1074
        %v1077 = vperm.slane %v965, %v1045
        %v1078 = vsel %vm1047, %v1077, %v1076
        %v1079 = vperm.slane %v968, %v1049
        %v1080 = vsel %vm1051, %v1079, %v1078
        %v1081 = vperm.slane %v971, %v1006
        %v1082 = vperm.slane %v974, %v1041
        %v1083 = vsel %vm1043, %v1082, %v1081
        %v1084 = vperm.slane %v977, %v1045
        %v1085 = vsel %vm1047, %v1084, %v1083
        %v1086 = vperm.slane %v980, %v1049
        %v1087 = vsel %vm1051, %v1086, %v1085
        %v1088 = vperm.slane %v983, %v1006
        %v1089 = vperm.slane %v986, %v1041
        %v1090 = vsel %vm1043, %v1089, %v1088
        %v1091 = vperm.slane %v989, %v1045
        %v1092 = vsel %vm1047, %v1091, %v1090
        %v1093 = vperm.slane %v992, %v1049
        %v1094 = vsel %vm1051, %v1093, %v1092
        %v1095 = vperm.slane %v995, %v1006
        %v1096 = vperm.slane %v998, %v1041
        %v1097 = vsel %vm1043, %v1096, %v1095
        %v1098 = vperm.slane %v1001, %v1045
        %v1099 = vsel %vm1047, %v1098, %v1097
        %v1100 = vperm.slane %v1004, %v1049
        %v1101 = vsel %vm1051, %v1100, %v1099
        %vm1102 = vcmask 1041409
        %v1103 = vsel %vm1102, %v1059, %v1052
        %vm1104 = vcmask 1042434
        %v1105 = vsel %vm1104, %v1066, %v1103
        %vm1106 = vcmask 1043459
        %v1107 = vsel %vm1106, %v1073, %v1105
        %vm1108 = vcmask 1044484
        %v1109 = vsel %vm1108, %v1080, %v1107
        %vm1110 = vcmask 1045509
        %v1111 = vsel %vm1110, %v1087, %v1109
        %vm1112 = vcmask 1046534
        %v1113 = vsel %vm1112, %v1094, %v1111
        %vm1114 = vcmask 1047559
        %v1115 = vsel %vm1114, %v1101, %v1113
        %v1117 = vsel %vm1007, %v1115, -inf
        %v1118 = vsel %vm576, %v1117, -inf
        %1119 = vmax.xlane.f32.xlu0 %v1118
        %v1120 = vpop.xlane.xlu0 %1119
        %v1121 = vsub.f32 %v1117, %v1120
        %v1122 = vmul.f32 %v1121, 1.442695
        %v1123 = vpow.pop %v1122
        %v1124 = vsel %vm576, %v1123, 0.0
        %1125 = vadd.xlane.f32.xlu0 %v1124
        %v1126 = vpop.xlane.xlu0 %1125
        %v1127 = vrcp.pop %v1126
        %v1128 = vmul.f32 %v1123, %v1127
        %v1130 = vrot.slane %v1128, 1
        %v1131 = vrot.slane %v1128, 2
        %v1132 = vrot.slane %v1128, 3
        %v1133 = vrot.slane %v1128, 4
        %v1134 = vrot.slane %v1128, 5
        %v1135 = vrot.slane %v1128, 6
        %v1136 = vrot.slane %v1128, 7
        %v1144 = vpack.c.bf16 %v1128, %v1128
        %v1145 = vpack.c.bf16 %v1130, %v1130
        %v1146 = vpack.c.bf16 %v1131, %v1131
        %v1147 = vpack.c.bf16 %v1132, %v1132
        %v1148 = vpack.c.bf16 %v1133, %v1133
        %v1149 = vpack.c.bf16 %v1134, %v1134
        %v1150 = vpack.c.bf16 %v1135, %v1135
        %v1151 = vpack.c.bf16 %v1136, %v1136
        %v1155 = vsel %vm576, %v1144, 0
        %1157 = vmatpush.bf16.msra.mxu0 0
        %1158 = vmatpush.bf16.msra.mxu0 0
        %1159 = vmatpush.bf16.msra.mxu0 0
        %1160 = vmatpush.bf16.msra.mxu0 0
        %1161 = vmatpush.bf16.msra.mxu0 0
        %1162 = vmatpush.bf16.msra.mxu0 0
        %1163 = vmatpush.bf16.msra.mxu0 %v549
        %1164 = vmatpush.bf16.msra.mxu0 %v548
        %1165 = vmatmul.bf16.gmra.mxu0 %v1155
        %v1166 = vpop.f32.mrf.mxu0
        %v1167 = vadd.f32 0.0, %v1166
        %v1168 = vpop.f32.mrf.mxu0
        %1169 = vdwg.mxu0
        %v1173 = vsel %vm576, %v1145, 0
        %1175 = vmatpush.bf16.msra.mxu0 0
        %1176 = vmatpush.bf16.msra.mxu0 0
        %1177 = vmatpush.bf16.msra.mxu0 0
        %1178 = vmatpush.bf16.msra.mxu0 0
        %1179 = vmatpush.bf16.msra.mxu0 0
        %1180 = vmatpush.bf16.msra.mxu0 0
        %1181 = vmatpush.bf16.msra.mxu0 %v551
        %1182 = vmatpush.bf16.msra.mxu0 %v550
        %1183 = vmatmul.bf16.gmra.mxu0 %v1173
        %v1184 = vpop.f32.mrf.mxu0
        %v1185 = vadd.f32 0.0, %v1184
        %v1186 = vpop.f32.mrf.mxu0
        %1187 = vdwg.mxu0
        %v1191 = vsel %vm576, %v1146, 0
        %1193 = vmatpush.bf16.msra.mxu0 0
        %1194 = vmatpush.bf16.msra.mxu0 0
        %1195 = vmatpush.bf16.msra.mxu0 0
        %1196 = vmatpush.bf16.msra.mxu0 0
        %1197 = vmatpush.bf16.msra.mxu0 0
        %1198 = vmatpush.bf16.msra.mxu0 0
        %1199 = vmatpush.bf16.msra.mxu0 %v553
        %1200 = vmatpush.bf16.msra.mxu0 %v552
        %1201 = vmatmul.bf16.gmra.mxu0 %v1191
        %v1202 = vpop.f32.mrf.mxu0
        %v1203 = vadd.f32 0.0, %v1202
        %v1204 = vpop.f32.mrf.mxu0
        %1205 = vdwg.mxu0
        %v1209 = vsel %vm576, %v1147, 0
        %1211 = vmatpush.bf16.msra.mxu0 0
        %1212 = vmatpush.bf16.msra.mxu0 0
        %1213 = vmatpush.bf16.msra.mxu0 0
        %1214 = vmatpush.bf16.msra.mxu0 0
        %1215 = vmatpush.bf16.msra.mxu0 0
        %1216 = vmatpush.bf16.msra.mxu0 0
        %1217 = vmatpush.bf16.msra.mxu0 %v555
        %1218 = vmatpush.bf16.msra.mxu0 %v554
        %1219 = vmatmul.bf16.gmra.mxu0 %v1209
        %v1220 = vpop.f32.mrf.mxu0
        %v1221 = vadd.f32 0.0, %v1220
        %v1222 = vpop.f32.mrf.mxu0
        %1223 = vdwg.mxu0
        %v1227 = vsel %vm576, %v1148, 0
        %1229 = vmatpush.bf16.msra.mxu0 0
        %1230 = vmatpush.bf16.msra.mxu0 0
        %1231 = vmatpush.bf16.msra.mxu0 0
        %1232 = vmatpush.bf16.msra.mxu0 0
        %1233 = vmatpush.bf16.msra.mxu0 0
        %1234 = vmatpush.bf16.msra.mxu0 0
        %1235 = vmatpush.bf16.msra.mxu0 %v557
        %1236 = vmatpush.bf16.msra.mxu0 %v556
        %1237 = vmatmul.bf16.gmra.mxu0 %v1227
        %v1238 = vpop.f32.mrf.mxu0
        %v1239 = vadd.f32 0.0, %v1238
        %v1240 = vpop.f32.mrf.mxu0
        %1241 = vdwg.mxu0
        %v1245 = vsel %vm576, %v1149, 0
        %1247 = vmatpush.bf16.msra.mxu0 0
        %1248 = vmatpush.bf16.msra.mxu0 0
        %1249 = vmatpush.bf16.msra.mxu0 0
        %1250 = vmatpush.bf16.msra.mxu0 0
        %1251 = vmatpush.bf16.msra.mxu0 0
        %1252 = vmatpush.bf16.msra.mxu0 0
        %1253 = vmatpush.bf16.msra.mxu0 %v559
        %1254 = vmatpush.bf16.msra.mxu0 %v558
        %1255 = vmatmul.bf16.gmra.mxu0 %v1245
        %v1256 = vpop.f32.mrf.mxu0
        %v1257 = vadd.f32 0.0, %v1256
        %v1258 = vpop.f32.mrf.mxu0
        %1259 = vdwg.mxu0
        %v1263 = vsel %vm576, %v1150, 0
        %1265 = vmatpush.bf16.msra.mxu0 0
        %1266 = vmatpush.bf16.msra.mxu0 0
        %1267 = vmatpush.bf16.msra.mxu0 0
        %1268 = vmatpush.bf16.msra.mxu0 0
        %1269 = vmatpush.bf16.msra.mxu0 0
        %1270 = vmatpush.bf16.msra.mxu0 0
        %1271 = vmatpush.bf16.msra.mxu0 %v561
        %1272 = vmatpush.bf16.msra.mxu0 %v560
        %1273 = vmatmul.bf16.gmra.mxu0 %v1263
        %v1274 = vpop.f32.mrf.mxu0
        %v1275 = vadd.f32 0.0, %v1274
        %v1276 = vpop.f32.mrf.mxu0
        %1277 = vdwg.mxu0
        %v1281 = vsel %vm576, %v1151, 0
        %1283 = vmatpush.bf16.msra.mxu0 0
        %1284 = vmatpush.bf16.msra.mxu0 0
        %1285 = vmatpush.bf16.msra.mxu0 0
        %1286 = vmatpush.bf16.msra.mxu0 0
        %1287 = vmatpush.bf16.msra.mxu0 0
        %1288 = vmatpush.bf16.msra.mxu0 0
        %1289 = vmatpush.bf16.msra.mxu0 %v563
        %1290 = vmatpush.bf16.msra.mxu0 %v562
        %1291 = vmatmul.bf16.gmra.mxu0 %v1281
        %v1292 = vpop.f32.mrf.mxu0
        %v1293 = vadd.f32 0.0, %v1292
        %v1294 = vpop.f32.mrf.mxu0
        %1295 = vdwg.mxu0
        %v1304 = vrot.slane %v1185, 7
        %v1305 = vsel %vm1102, %v1304, %v1167
        %v1306 = vrot.slane %v1203, 6
        %v1307 = vsel %vm1104, %v1306, %v1305
        %v1308 = vrot.slane %v1221, 5
        %v1309 = vsel %vm1106, %v1308, %v1307
        %v1310 = vrot.slane %v1239, 4
        %v1311 = vsel %vm1108, %v1310, %v1309
        %v1312 = vrot.slane %v1257, 3
        %v1313 = vsel %vm1110, %v1312, %v1311
        %v1314 = vrot.slane %v1275, 2
        %v1315 = vsel %vm1112, %v1314, %v1313
        %v1316 = vrot.slane %v1293, 1
        %v1317 = vsel %vm1114, %v1316, %v1315
        %1319 = vst.msk [vmem:[%s402] sm:$0xff] %vm576, %v1317
        %1320 = vst.msk [vmem:[%s409] sm:$0xff] %vm576, %v1128
        %s1321 = sand.u32 %s198, 1
        %s1322 = scalar_lea.sflag [#allocation4], %s1321
        %s1323 = sand.u32 %s198, 1
        %s1324 = smul.addr %s1323, 8
        %s1325 = scalar_lea.vmem [#allocation10], %s1324
        %s1326 = sand.u32 %s224, 1
        %s1327 = scalar_lea.sflag [#allocation12], %s1326
        %s1328 = sand.u32 %s224, 1
        %s1329 = smul.addr %s1328, 8
        %s1330 = scalar_lea.vmem [#allocation11], %s1329
        // Predicated region
        $region65: #{tpu_custom_call.1} parent=47 // pred_check
          %p1331 = pneg %p208
        $region66: #{tpu_custom_call.1} parent=47 // pred_check_branch
          %1333 = sbr.rel (%p1331) target = $region68
        $region67: #{tpu_custom_call.1} parent=47 // pred_region
          %1335 = vsyncadd %s1322, 0
          %s1336 = smul.addr %s33, 8
          %s1337 = scalar_lea.hbm %s7, %s1336
          %s1339 = sshll.u32 %s1325, 4
          %s1340 = int_to_ptr.vmem [resolvable:$true] %s1339
          %s1341 = sshll.u32 %s1337, 4
          %s1342 = int_to_ptr.hbm [resolvable:$true] %s1341
          %1344 = dma.vmem_to_hbm [thread:$0]  %s1340, 128, %s1342, %s1322
        $region68: #{tpu_custom_call.1} parent=47 // pred_fallthru
          _
        // Predicated region
        $region69: #{tpu_custom_call.1} parent=47 // pred_check
          %p1345 = pneg %p234
        $region70: #{tpu_custom_call.1} parent=47 // pred_check_branch
          %1347 = sbr.rel (%p1345) target = $region72
        $region71: #{tpu_custom_call.1} parent=47 // pred_region
          %1349 = vsyncadd %s1327, 0
          %s1350 = smul.addr %s33, 8
          %s1351 = scalar_lea.hbm %s8, %s1350
          %s1353 = sshll.u32 %s1330, 4
          %s1354 = int_to_ptr.vmem [resolvable:$true] %s1353
          %s1355 = sshll.u32 %s1351, 4
          %s1356 = int_to_ptr.hbm [resolvable:$true] %s1355
          %1358 = dma.vmem_to_hbm [thread:$0]  %s1354, 128, %s1356, %s1327
        $region72: #{tpu_custom_call.1} parent=47 // pred_fallthru
          _
      $region48: #{tpu_custom_call.1} parent=5 // pred_fallthru
        _
      %p1359 = scmp.le.s32.totalorder 2, %s28
      // Predicated region
      $region73: #{tpu_custom_call.1} parent=5 // pred_check
        %p1360 = pneg %p1359
      $region74: #{tpu_custom_call.1} parent=5 // pred_check_branch
        %1362 = sbr.rel (%p1360) target = $region76
      $region75: #{tpu_custom_call.1} parent=5 // pred_region
        %s1363 = ssub.s32 %s28, 2
        // Predicated region
        $region77: #{tpu_custom_call.1} parent=75 // pred_check
          %p1364 = pneg %p214
        $region78: #{tpu_custom_call.1} parent=75 // pred_check_branch
          %1366 = sbr.rel (%p1364) target = $region80
        $region79: #{tpu_custom_call.1} parent=75 // pred_region
          %s1367 = sand.u32 %s199, 1
          %s1368 = scalar_lea.sflag [#allocation4], %s1367
          %s1369 = sand.u32 %s199, 1
          %s1370 = smul.addr %s1369, 8
          %s1371 = scalar_lea.vmem [#allocation10], %s1370
          %1373 = dma.done %s1368, 128
        $region80: #{tpu_custom_call.1} parent=75 // pred_fallthru
          _
        // Predicated region
        $region81: #{tpu_custom_call.1} parent=75 // pred_check
          %p1374 = pneg %p240
        $region82: #{tpu_custom_call.1} parent=75 // pred_check_branch
          %1376 = sbr.rel (%p1374) target = $region84
        $region83: #{tpu_custom_call.1} parent=75 // pred_region
          %s1377 = sand.u32 %s225, 1
          %s1378 = scalar_lea.sflag [#allocation12], %s1377
          %s1379 = sand.u32 %s225, 1
          %s1380 = smul.addr %s1379, 8
          %s1381 = scalar_lea.vmem [#allocation11], %s1380
          %1383 = dma.done %s1378, 128
        $region84: #{tpu_custom_call.1} parent=75 // pred_fallthru
          _
      $region76: #{tpu_custom_call.1} parent=5 // pred_fallthru
        _
    $region6: #{tpu_custom_call.1} parent=1 // loop_footer
      %s32 = sadd.s32 1, %s28
    $region7: #{tpu_custom_call.1} parent=1 // loop_footer_branch
      %27 = sbr.rel target = $region3
    $region8: #{tpu_custom_call.1} parent=1 // loop_exit
      _
    %1384 = vsyncpa [#allocation3], 1
    %s1385 = scalar_lea.sflag [#allocation3], 1
    %1386 = vsyncpa %s1385, 1
    %1387 = vsyncpa [#allocation6], 1
    %s1388 = scalar_lea.sflag [#allocation6], 1
    %1389 = vsyncpa %s1388, 1
    %1390 = vsyncpa [#allocation9], 1
    %1391 = vsyncpa [#allocation4], 1
    %s1392 = scalar_lea.sflag [#allocation4], 1
    %1393 = vsyncpa %s1392, 1
    %1394 = vsyncpa [#allocation12], 1
    %s1395 = scalar_lea.sflag [#allocation12], 1
    %1396 = vsyncpa %s1395, 1

</llo_original>
